<compile_context>
chip_gen: v5e
topology: v5e:2x2
jax: 0.10.0
libtpu: 0.0.40
codegen_flags: <defaults>
</compile_context>

<pallas_src>
import functools

import jax
import jax.numpy as jnp
from jax.experimental import pallas as pl
from jax.experimental.pallas import tpu as pltpu


def _conv_bn_relu_kernel(x_ref, w_ref, affine_ref, o_ref, *, ksize, has_scale, has_relu):
    # x_ref:      (1, HpP, Wout, K*Cin)  (kw,cin)-packed padded NHWC input of one batch element
    #                                    (bf16); resident in VMEM across the H-tile grid steps.
    # w_ref:      (K, K*Cin, Cout)       conv weights, contraction packed as (kw, cin) per kh (bf16);
    #                                    resident across the whole grid (constant block index).
    # affine_ref: (2, Cout)              f32 per-channel [BN scale, conv-bias(+BN) shift].
    # o_ref:      (1, TH, Wout, Cout)    output tile (no Cout padding -> exact HBM writes).
    TH = o_ref.shape[1]
    row0 = pl.multiple_of(pl.program_id(1) * TH, TH)   # first output row of this H tile

    # K accumulated MXU matmuls, one per kh tap row.  Every operand slice is a cheap leading-dim
    # pl.ds slice; the kw taps were packed into the channel dim wrapper-side, so there is no
    # lane concatenation and no misaligned W slicing in the kernel.
    acc = None
    for kh in range(ksize):
        xh = x_ref[0, pl.ds(row0 + kh, TH)]            # (TH, Wout, K*Cin), bf16
        part = jnp.einsum("hwc,cf->hwf", xh, w_ref[kh],
                          preferred_element_type=jnp.float32)   # f32 accumulation
        acc = part if acc is None else acc + part

    if has_scale:                                      # eval-mode BN scale, applied in f32
        acc = acc * affine_ref[0]
    acc = acc + affine_ref[1]                          # conv bias (+ folded BN shift)
    if has_relu:
        acc = jnp.maximum(acc, 0.0)
    o_ref[0] = acc.astype(o_ref.dtype)


def _pick_tile_h(h_out, w_out, target_elems=1024):
    # Per-step output tile of roughly target_elems elements: big enough that the ~0.35us grid-step
    # overhead and short-M MXU bursts do not dominate, small enough to keep steps pipelined.
    cap = max(1, min(h_out, max(1, target_elems // max(1, w_out))))
    # Prefer a divisor of h_out (no ragged tail) but never degrade below half the cap; for awkward
    # h_out we use a pl.cdiv grid and rely on Pallas masking the tail block's writes.
    for th in range(cap, max(1, cap // 2) - 1, -1):
        if h_out % th == 0:
            return th
    return cap


def _vmem_limit_bytes():
    # v5e / v6e have 128 MiB of VMEM per TensorCore; v7x only has 64 MiB, so leave headroom there.
    try:
        kind = jax.devices()[0].device_kind.lower()
    except Exception:  # pragma: no cover - defensive, default to the conservative limit
        kind = ""
    if "v5" in kind or "v6" in kind:
        return 96 * 1024 * 1024
    return 48 * 1024 * 1024


def conv_bn_relu(x_nchw, weight, bias, *, bn_params=None, has_relu=True,
                 padding=1, eps=1e-5, tile_h_target=1024, out_dtype=None):
    """Forward of ConvBnReLu (stride 1, dilation 1).

    x_nchw : (N, Cin, H, W)   float32 (PyTorch NCHW layout at the boundary)
    weight : (Cout, Cin, K, K) float32 (PyTorch conv weight layout)
    bias   : (Cout,)
    bn_params: None or dict with gamma / beta / running_mean / running_var (eval-mode BN)
    """
    N, Cin, H, W = x_nchw.shape
    Cout, Cin_w, K, K2 = weight.shape
    assert Cin_w == Cin and K == K2
    Hout = H + 2 * padding - (K - 1)
    Wout = W + 2 * padding - (K - 1)
    assert Hout > 0 and Wout > 0
    out_dtype = x_nchw.dtype if out_dtype is None else out_dtype

    # ---- per-channel affine epilogue: BN scale stays in f32 (not folded into bf16 weights),
    #      shift = conv bias (+ folded eval-mode BN shift) ----
    if bn_params is not None:
        gamma = bn_params["gamma"].astype(jnp.float32)
        beta = bn_params["beta"].astype(jnp.float32)
        mean = bn_params["running_mean"].astype(jnp.float32)
        var = bn_params["running_var"].astype(jnp.float32)
        scale = gamma / jnp.sqrt(var + eps)
        shift = scale * (bias.astype(jnp.float32) - mean) + beta
        has_scale = True
    else:
        scale = jnp.ones((Cout,), jnp.float32)
        shift = bias.astype(jnp.float32)
        has_scale = False
    affine = jnp.stack([scale, shift], axis=0)                     # (2, Cout) f32

    # ---- weights: (Cout, Cin, K, K) -> (K, K*Cin, Cout); contraction dim packed as (kw, cin) ----
    w3 = jnp.transpose(weight, (2, 3, 1, 0)).reshape(K, K * Cin, Cout).astype(jnp.bfloat16)
    KC = K * Cin

    # ---- input: NCHW -> NHWC bf16, spatial halo pad, then pre-pack the kw taps into the channel
    #      dim so the kernel only needs leading-dim row slices ----
    x_nhwc = jnp.transpose(x_nchw, (0, 2, 3, 1)).astype(jnp.bfloat16)
    x_pad = jnp.pad(x_nhwc, ((0, 0), (padding, padding), (padding, padding), (0, 0)))
    Hp = H + 2 * padding
    x_packed = jnp.concatenate([x_pad[:, :, kw:kw + Wout, :] for kw in range(K)], axis=-1)

    TH = _pick_tile_h(Hout, Wout, tile_h_target)
    nH = pl.cdiv(Hout, TH)
    # Zero-pad extra bottom rows so the last (possibly ragged) H tile's row slices stay in bounds.
    HpP = nH * TH + (K - 1)
    if HpP > Hp:
        x_packed = jnp.pad(x_packed, ((0, 0), (0, HpP - Hp), (0, 0), (0, 0)))

    grid = (N, nH)
    kernel = functools.partial(_conv_bn_relu_kernel, ksize=K,
                               has_scale=has_scale, has_relu=has_relu)

    # Whole packed per-batch slab resident in VMEM; its block index only changes with n, so when it
    # is large (v7x's 64 MiB VMEM) single-buffer it instead of double-buffering.
    x_index_map = lambda n, h: (n, 0, 0, 0)
    x_block_bytes = HpP * Wout * KC * 2
    if x_block_bytes > 8 * 1024 * 1024:
        x_spec = pl.BlockSpec((1, HpP, Wout, KC), x_index_map, pipeline_mode=pl.Buffered(1))
    else:
        x_spec = pl.BlockSpec((1, HpP, Wout, KC), x_index_map)

    out_itemsize = jnp.dtype(out_dtype).itemsize
    flops = 2 * N * Hout * Wout * K * K * Cin * Cout
    bytes_accessed = (N * HpP * Wout * KC * 2                     # bf16 packed input (read once/n)
                      + K * KC * Cout * 2                         # bf16 weights (read once)
                      + 2 * Cout * 4                              # f32 scale/shift
                      + N * Hout * Wout * Cout * out_itemsize)    # exact (unpadded) output

    out_nhwc = pl.pallas_call(
        kernel,
        out_shape=jax.ShapeDtypeStruct((N, Hout, Wout, Cout), out_dtype),
        grid_spec=pltpu.PrefetchScalarGridSpec(
            num_scalar_prefetch=0,
            grid=grid,
            in_specs=[
                x_spec,
                # Full weight / affine blocks with constant block index: DMA'd once, resident for
                # the whole grid (no per-H-tile weight re-reads).
                pl.BlockSpec((K, KC, Cout), lambda n, h: (0, 0, 0)),
                pl.BlockSpec((2, Cout), lambda n, h: (0, 0)),
            ],
            out_specs=pl.BlockSpec((1, TH, Wout, Cout), lambda n, h: (n, h, 0, 0)),
        ),
        compiler_params=pltpu.CompilerParams(
            # No in-grid reduction -> both axes parallel (megacore sharding stays legal on v7x).
            dimension_semantics=("parallel", "parallel"),
            vmem_limit_bytes=_vmem_limit_bytes(),
        ),
        cost_estimate=pl.CostEstimate(flops=flops, transcendentals=0,
                                      bytes_accessed=bytes_accessed),
    )(x_packed, w3, affine)

    return jnp.transpose(out_nhwc, (0, 3, 1, 2))   # NHWC -> NCHW (module contract)


def _reference(x_nchw, weight, bias, *, bn_params=None, has_relu=True, padding=1, eps=1e-5):
    out = jax.lax.conv_general_dilated(
        x_nchw, weight, window_strides=(1, 1),
        padding=((padding, padding), (padding, padding)),
        dimension_numbers=("NCHW", "OIHW", "NCHW"))
    out = out + bias.reshape(1, -1, 1, 1)
    if bn_params is not None:
        g = bn_params["gamma"].reshape(1, -1, 1, 1)
        b = bn_params["beta"].reshape(1, -1, 1, 1)
        m = bn_params["running_mean"].reshape(1, -1, 1, 1)
        v = bn_params["running_var"].reshape(1, -1, 1, 1)
        out = (out - m) / jnp.sqrt(v + eps) * g + b
    if has_relu:
        out = jnp.maximum(out, 0.0)
    return out


if __name__ == "__main__":
    key = jax.random.PRNGKey(0)
    k1, k2, k3, k4, k5, k6, k7 = jax.random.split(key, 7)

    N, Cin, Cout, H, W, K = 2, 4, 8, 16, 16, 3

    x = jax.random.normal(k1, (N, Cin, H, W), jnp.float32)
    weight = jax.random.normal(k2, (Cout, Cin, K, K), jnp.float32) * 0.1
    bias = jax.random.normal(k3, (Cout,), jnp.float32) * 0.1

    # bf16 matmul path -> compare against the f32 reference with a loosened tolerance.
    TOL = 5e-2

    # Module defaults: has_bn=False, has_relu=True.
    out = conv_bn_relu(x, weight, bias, bn_params=None, has_relu=True)
    out = jax.block_until_ready(out)
    ref = _reference(x, weight, bias, bn_params=None, has_relu=True)
    assert out.shape == (N, Cout, H, W), out.shape
    assert jnp.allclose(out, ref, atol=TOL, rtol=TOL), float(jnp.max(jnp.abs(out - ref)))

    # has_bn=True (eval-mode BN: scale applied in the f32 epilogue, shift folded with conv bias).
    bn = {
        "gamma": 1.0 + 0.1 * jax.random.normal(k4, (Cout,), jnp.float32),
        "beta": 0.1 * jax.random.normal(k5, (Cout,), jnp.float32),
        "running_mean": 0.1 * jax.random.normal(k6, (Cout,), jnp.float32),
        "running_var": jax.random.uniform(k7, (Cout,), jnp.float32, minval=0.5, maxval=1.5),
    }
    out_bn = conv_bn_relu(x, weight, bias, bn_params=bn, has_relu=True)
    out_bn = jax.block_until_ready(out_bn)
    ref_bn = _reference(x, weight, bias, bn_params=bn, has_relu=True)
    assert out_bn.shape == (N, Cout, H, W), out_bn.shape
    assert jnp.allclose(out_bn, ref_bn, atol=TOL, rtol=TOL), float(jnp.max(jnp.abs(out_bn - ref_bn)))

    print("KERNEL_OK")
</pallas_src>

<mosaic_0001>
module attributes {stable_mosaic.version = 11 : i64} {
  func.func @_conv_bn_relu_kernel(%arg0: i32, %arg1: i32, %arg2: memref<1x18x16x12xbf16, #tpu.memory_space<vmem>>, %arg3: memref<3x12x8xbf16, #tpu.memory_space<vmem>>, %arg4: memref<2x8xf32, #tpu.memory_space<vmem>>, %arg5: memref<1x16x16x8xf32, #tpu.memory_space<vmem>>) attributes {dimension_semantics = [#tpu.dimension_semantics<parallel>, #tpu.dimension_semantics<parallel>], iteration_bounds = array<i64: 2, 1>, scalar_prefetch = 0 : i64, scratch_operands = 0 : i64, tpu.core_type = #tpu.core_type<tc>, window_params = [{transform_indices = @transform_0, window_bounds = array<i64: 1, 18, 16, 12>}, {pipeline_mode = #tpu.pipeline_mode<synchronous>, transform_indices = @transform_1, window_bounds = array<i64: 3, 12, 8>}, {pipeline_mode = #tpu.pipeline_mode<synchronous>, transform_indices = @transform_2, window_bounds = array<i64: 2, 8>}, {transform_indices = @transform_3, window_bounds = array<i64: 1, 16, 16, 8>}]} {
    %c16_i32 = arith.constant 16 : i32
    %0 = arith.muli %arg1, %c16_i32 : i32
    %1 = tpu.assume_multiple %0, 16 : i32
    %c0_i32 = arith.constant 0 : i32
    %2 = arith.addi %1, %c0_i32 : i32
    %c0 = arith.constant 0 : index
    %3 = arith.index_cast %2 : i32 to index
    %c0_0 = arith.constant 0 : index
    %c0_1 = arith.constant 0 : index
    %4 = vector.load %arg2[%c0, %3, %c0_0, %c0_1] : memref<1x18x16x12xbf16, #tpu.memory_space<vmem>>, vector<1x16x16x12xbf16>
    %5 = vector.shape_cast %4 : vector<1x16x16x12xbf16> to vector<16x16x12xbf16>
    %c0_2 = arith.constant 0 : index
    %c0_3 = arith.constant 0 : index
    %c0_4 = arith.constant 0 : index
    %6 = vector.load %arg3[%c0_2, %c0_3, %c0_4] : memref<3x12x8xbf16, #tpu.memory_space<vmem>>, vector<1x12x8xbf16>
    %7 = vector.shape_cast %6 : vector<1x12x8xbf16> to vector<12x8xbf16>
    "tpu.trace_start"() <{level = 10 : i32, message = "hwc,cf->hwf"}> : () -> ()
    %cst = arith.constant dense<0.000000e+00> : vector<16x16x8xf32>
    %8 = tpu.matmul %5, %7, %cst {dimension_numbers = #tpu.dot_dimension_numbers<[2], [0], [0, 1], [1], [0, 0, 0, 1, 1, 1], [], []>} : vector<16x16x12xbf16>, vector<12x8xbf16>, vector<16x16x8xf32> -> vector<16x16x8xf32>
    "tpu.trace_stop"() : () -> ()
    %c1_i32 = arith.constant 1 : i32
    %9 = arith.addi %1, %c1_i32 : i32
    %c0_5 = arith.constant 0 : index
    %10 = arith.index_cast %9 : i32 to index
    %c0_6 = arith.constant 0 : index
    %c0_7 = arith.constant 0 : index
    %11 = vector.load %arg2[%c0_5, %10, %c0_6, %c0_7] : memref<1x18x16x12xbf16, #tpu.memory_space<vmem>>, vector<1x16x16x12xbf16>
    %12 = vector.shape_cast %11 : vector<1x16x16x12xbf16> to vector<16x16x12xbf16>
    %c1 = arith.constant 1 : index
    %c0_8 = arith.constant 0 : index
    %c0_9 = arith.constant 0 : index
    %13 = vector.load %arg3[%c1, %c0_8, %c0_9] : memref<3x12x8xbf16, #tpu.memory_space<vmem>>, vector<1x12x8xbf16>
    %14 = vector.shape_cast %13 : vector<1x12x8xbf16> to vector<12x8xbf16>
    "tpu.trace_start"() <{level = 10 : i32, message = "hwc,cf->hwf"}> : () -> ()
    %cst_10 = arith.constant dense<0.000000e+00> : vector<16x16x8xf32>
    %15 = tpu.matmul %12, %14, %cst_10 {dimension_numbers = #tpu.dot_dimension_numbers<[2], [0], [0, 1], [1], [0, 0, 0, 1, 1, 1], [], []>} : vector<16x16x12xbf16>, vector<12x8xbf16>, vector<16x16x8xf32> -> vector<16x16x8xf32>
    "tpu.trace_stop"() : () -> ()
    %16 = arith.addf %8, %15 : vector<16x16x8xf32>
    %c2_i32 = arith.constant 2 : i32
    %17 = arith.addi %1, %c2_i32 : i32
    %c0_11 = arith.constant 0 : index
    %18 = arith.index_cast %17 : i32 to index
    %c0_12 = arith.constant 0 : index
    %c0_13 = arith.constant 0 : index
    %19 = vector.load %arg2[%c0_11, %18, %c0_12, %c0_13] : memref<1x18x16x12xbf16, #tpu.memory_space<vmem>>, vector<1x16x16x12xbf16>
    %20 = vector.shape_cast %19 : vector<1x16x16x12xbf16> to vector<16x16x12xbf16>
    %c2 = arith.constant 2 : index
    %c0_14 = arith.constant 0 : index
    %c0_15 = arith.constant 0 : index
    %21 = vector.load %arg3[%c2, %c0_14, %c0_15] : memref<3x12x8xbf16, #tpu.memory_space<vmem>>, vector<1x12x8xbf16>
    %22 = vector.shape_cast %21 : vector<1x12x8xbf16> to vector<12x8xbf16>
    "tpu.trace_start"() <{level = 10 : i32, message = "hwc,cf->hwf"}> : () -> ()
    %cst_16 = arith.constant dense<0.000000e+00> : vector<16x16x8xf32>
    %23 = tpu.matmul %20, %22, %cst_16 {dimension_numbers = #tpu.dot_dimension_numbers<[2], [0], [0, 1], [1], [0, 0, 0, 1, 1, 1], [], []>} : vector<16x16x12xbf16>, vector<12x8xbf16>, vector<16x16x8xf32> -> vector<16x16x8xf32>
    "tpu.trace_stop"() : () -> ()
    %24 = arith.addf %16, %23 : vector<16x16x8xf32>
    %c1_17 = arith.constant 1 : index
    %c0_18 = arith.constant 0 : index
    %25 = vector.load %arg4[%c1_17, %c0_18] : memref<2x8xf32, #tpu.memory_space<vmem>>, vector<1x8xf32>
    %26 = vector.shape_cast %25 : vector<1x8xf32> to vector<8xf32>
    %27 = vector.shape_cast %26 : vector<8xf32> to vector<1x1x8xf32>
    %28 = vector.broadcast %27 : vector<1x1x8xf32> to vector<16x16x8xf32>
    %29 = arith.addf %24, %28 : vector<16x16x8xf32>
    %cst_19 = arith.constant 0.000000e+00 : f32
    %30 = vector.broadcast %cst_19 : f32 to vector<16x16x8xf32>
    %31 = arith.maximumf %29, %30 : vector<16x16x8xf32>
    %c0_20 = arith.constant 0 : index
    %c0_21 = arith.constant 0 : index
    %c0_22 = arith.constant 0 : index
    %c0_23 = arith.constant 0 : index
    %32 = vector.load %arg5[%c0_20, %c0_21, %c0_22, %c0_23] : memref<1x16x16x8xf32, #tpu.memory_space<vmem>>, vector<1x16x16x8xf32>
    %33 = vector.shape_cast %32 : vector<1x16x16x8xf32> to vector<16x16x8xf32>
    %34 = vector.shape_cast %31 : vector<16x16x8xf32> to vector<1x16x16x8xf32>
    tpu.vector_store %arg5[%c0_20, %c0_21, %c0_22, %c0_23], %34 {strides = array<i32>} : memref<1x16x16x8xf32, #tpu.memory_space<vmem>>, vector<1x16x16x8xf32>,
    return
  }
  func.func @transform_0(%arg0: i32, %arg1: i32) -> (i32, i32, i32, i32) {
    %c0_i32 = arith.constant 0 : i32
    %c0_i32_0 = arith.constant 0 : i32
    %c0_i32_1 = arith.constant 0 : i32
    %c0_i32_2 = arith.constant 0 : i32
    return %arg0, %c0_i32, %c0_i32_0, %c0_i32_1 : i32, i32, i32, i32
  }
  func.func @transform_1(%arg0: i32, %arg1: i32) -> (i32, i32, i32) {
    %c0_i32 = arith.constant 0 : i32
    %c0_i32_0 = arith.constant 0 : i32
    %c0_i32_1 = arith.constant 0 : i32
    %c0_i32_2 = arith.constant 0 : i32
    return %c0_i32, %c0_i32_0, %c0_i32_1 : i32, i32, i32
  }
  func.func @transform_2(%arg0: i32, %arg1: i32) -> (i32, i32) {
    %c0_i32 = arith.constant 0 : i32
    %c0_i32_0 = arith.constant 0 : i32
    %c0_i32_1 = arith.constant 0 : i32
    return %c0_i32, %c0_i32_0 : i32, i32
  }
  func.func @transform_3(%arg0: i32, %arg1: i32) -> (i32, i32, i32, i32) {
    %c0_i32 = arith.constant 0 : i32
    %c0_i32_0 = arith.constant 0 : i32
    %c0_i32_1 = arith.constant 0 : i32
    return %arg0, %arg1, %c0_i32, %c0_i32_0 : i32, i32, i32, i32
  }
}

</mosaic_0001>

<llo_original>
// kernel: tpu_custom_call.1
$region0: #{tpu_custom_call.1}
  #allocation0 [shape = 'u32[]', space=smem, size = 0x4, offset = 0x4, fixed_abs, tag = 'smem constant byte address 0x4 - core index']
  #allocation1 [shape = 'u32[72,128]{1,0:T(1,128)}', space=vmem, size = 0x9000, scoped, tag = 'internal scratch']
  %s0 = inlined_call_operand.vmem [shape: bf16[2,18,16,12], index: 0, kind: input, shape index: {}]
  %s1 = inlined_call_operand.vmem [shape: bf16[3,12,8], index: 1, kind: input, shape index: {}]
  %s2 = inlined_call_operand.vmem [shape: f32[2,8], index: 2, kind: input, shape index: {}]
  %s3 = inlined_call_operand.vmem [shape: f32[2,16,16,8], index: 3, kind: output, shape index: {}]
  %s4 = sld [smem:[#allocation0]]
  $region45: #{tpu_custom_call.1} parent=0
    _
  %s6 = ssub.s32 1, %s4
  %s7 = scalar_select 0, %s6, %s4
  loop: start=0, step=1, limit=4
  $region2: #{tpu_custom_call.1} parent=0 // loop_pre_header
    _
  $region3: #{tpu_custom_call.1} parent=0 // loop_header
    %s9 = sphi 0, %s13
    %p10 = scmp.ge.s32.totalorder %s9, 4
    %s16 = sphi 0, %s28
    %s17 = sphi 0, %s24
    %s18 = sphi 0, %s16
    %s19 = sphi 0, %s17
    %s20 = sphi 0, %s18
    %s21 = sphi 0, %s19
    %s31 = sphi 0, %s33
    %s34 = sphi 0, %s31
    %s35 = sphi 0, %s34
    %s51 = sphi 0, %s35
    %s55 = sphi 0, %s55
    %s57 = sphi 0, %s55
    %s58 = sphi 0, %s57
    %s72 = sphi 0, %s58
    %s76 = sphi 0, %s76
    %s78 = sphi 0, %s76
    %s79 = sphi 0, %s78
    %s93 = sphi 0, %s79
    %s101 = sphi 0, %s103
    %s104 = sphi 0, %s101
    %s105 = sphi 0, %s104
    %s121 = sphi 0, %s105
  $region4: #{tpu_custom_call.1} parent=0 // loop_header_branch
    %12 = sbr.rel (%p10) target = $region8
  $region5: #{tpu_custom_call.1} parent=0 // loop_body
    %s14 = ssub.s32 %s9, 1
    %s15 = ssub.s32 %s9, 2
    %s22 = sadd.s32 1, %s17
    %p23 = scmp.ge.s32.totalorder %s22, 1
    %s24 = scalar_select %p23, 0, %s22
    %s25 = sadd.s32 1, %s16
    %s26 = scalar_select %p23, %s25, %s16
    %p27 = scmp.ge.s32.totalorder %s26, 2
    %s28 = scalar_select %p27, 0, %s26
    %s29 = ssub.s32 %s16, %s28
    %p30 = scmp.eq.s32.totalorder %s29, 0
    %s32 = sadd.s32 %s31, 1
    %s33 = scalar_select %p30, %s31, %s32
    %p36 = pneg %p30
    %p37 = scmp.eq.s32.totalorder %s9, 1
    %p38 = por %p36, %p37
    %p39 = scmp.ne.s32.totalorder %s31, %s34
    %p40 = scmp.eq.s32.totalorder %s9, 0
    %p41 = por %p39, %p40
    %p42 = scmp.ne.s32.totalorder %s31, %s34
    %p43 = scmp.eq.s32.totalorder %s14, 1
    %p44 = por %p42, %p43
    %p45 = scmp.ne.s32.totalorder %s34, %s35
    %p46 = scmp.eq.s32.totalorder %s14, 0
    %p47 = por %p45, %p46
    %p48 = scmp.ne.s32.totalorder %s34, %s35
    %p49 = scmp.eq.s32.totalorder %s15, 1
    %p50 = por %p48, %p49
    %p52 = scmp.ne.s32.totalorder %s35, %s51
    %p53 = scmp.eq.s32.totalorder %s15, 0
    %p54 = por %p52, %p53
    %s56 = sadd.s32 %s55, 1
    %p59 = scmp.eq.s32.totalorder %s9, 1
    %p60 = scmp.ne.s32.totalorder %s55, %s57
    %p61 = scmp.eq.s32.totalorder %s9, 0
    %p62 = por %p60, %p61
    %p63 = scmp.ne.s32.totalorder %s55, %s57
    %p64 = scmp.eq.s32.totalorder %s14, 1
    %p65 = por %p63, %p64
    %p66 = scmp.ne.s32.totalorder %s57, %s58
    %p67 = scmp.eq.s32.totalorder %s14, 0
    %p68 = por %p66, %p67
    %p69 = scmp.ne.s32.totalorder %s57, %s58
    %p70 = scmp.eq.s32.totalorder %s15, 1
    %p71 = por %p69, %p70
    %p73 = scmp.ne.s32.totalorder %s58, %s72
    %p74 = scmp.eq.s32.totalorder %s15, 0
    %p75 = por %p73, %p74
    %s77 = sadd.s32 %s76, 1
    %p80 = scmp.eq.s32.totalorder %s9, 1
    %p81 = scmp.ne.s32.totalorder %s76, %s78
    %p82 = scmp.eq.s32.totalorder %s9, 0
    %p83 = por %p81, %p82
    %p84 = scmp.ne.s32.totalorder %s76, %s78
    %p85 = scmp.eq.s32.totalorder %s14, 1
    %p86 = por %p84, %p85
    %p87 = scmp.ne.s32.totalorder %s78, %s79
    %p88 = scmp.eq.s32.totalorder %s14, 0
    %p89 = por %p87, %p88
    %p90 = scmp.ne.s32.totalorder %s78, %s79
    %p91 = scmp.eq.s32.totalorder %s15, 1
    %p92 = por %p90, %p91
    %p94 = scmp.ne.s32.totalorder %s79, %s93
    %p95 = scmp.eq.s32.totalorder %s15, 0
    %p96 = por %p94, %p95
    %s97 = ssub.s32 %s16, %s28
    %s98 = ssub.s32 %s17, %s24
    %s99 = sor.u32 %s97, %s98
    %p100 = scmp.eq.s32.totalorder %s99, 0
    %s102 = sadd.s32 %s101, 1
    %s103 = scalar_select %p100, %s101, %s102
    %p106 = pneg %p100
    %p107 = scmp.eq.s32.totalorder %s9, 1
    %p108 = por %p106, %p107
    %p109 = scmp.ne.s32.totalorder %s101, %s104
    %p110 = scmp.eq.s32.totalorder %s9, 0
    %p111 = por %p109, %p110
    %p112 = scmp.ne.s32.totalorder %s101, %s104
    %p113 = scmp.eq.s32.totalorder %s14, 1
    %p114 = por %p112, %p113
    %p115 = scmp.ne.s32.totalorder %s104, %s105
    %p116 = scmp.eq.s32.totalorder %s14, 0
    %p117 = por %p115, %p116
    %p118 = scmp.ne.s32.totalorder %s104, %s105
    %p119 = scmp.eq.s32.totalorder %s15, 1
    %p120 = por %p118, %p119
    %p122 = scmp.ne.s32.totalorder %s105, %s121
    %p123 = scmp.eq.s32.totalorder %s15, 0
    %p124 = por %p122, %p123
    %p125 = scmp.le.s32.totalorder 1, %s9
    %p126 = scmp.lt.s32.totalorder %s9, 3
    %p127 = pnand %p125, %p126
    %p128 = pneg %p127
    // Predicated region
    $region9: #{tpu_custom_call.1} parent=5 // pred_check
      _
    $region10: #{tpu_custom_call.1} parent=5 // pred_check_branch
      %130 = sbr.rel (%p127) target = $region12
    $region11: #{tpu_custom_call.1} parent=5 // pred_region
      %s131 = ssub.s32 %s9, 1
      // Predicated region
      $region13: #{tpu_custom_call.1} parent=11 // pred_check
        %p132 = pneg %p68
      $region14: #{tpu_custom_call.1} parent=11 // pred_check_branch
        %134 = sbr.rel (%p132) target = $region16
      $region15: #{tpu_custom_call.1} parent=11 // pred_region
        _
      $region16: #{tpu_custom_call.1} parent=11 // pred_fallthru
        _
      // Predicated region
      $region17: #{tpu_custom_call.1} parent=11 // pred_check
        %p135 = pneg %p89
      $region18: #{tpu_custom_call.1} parent=11 // pred_check_branch
        %137 = sbr.rel (%p135) target = $region20
      $region19: #{tpu_custom_call.1} parent=11 // pred_region
        _
      $region20: #{tpu_custom_call.1} parent=11 // pred_fallthru
        _
    $region12: #{tpu_custom_call.1} parent=5 // pred_fallthru
      _
    %p138 = scmp.lt.s32.totalorder %s9, 2
    // Predicated region
    $region21: #{tpu_custom_call.1} parent=5 // pred_check
      %p139 = pneg %p138
    $region22: #{tpu_custom_call.1} parent=5 // pred_check_branch
      %141 = sbr.rel (%p139) target = $region24
    $region23: #{tpu_custom_call.1} parent=5 // pred_region
      // Predicated region
      $region25: #{tpu_custom_call.1} parent=23 // pred_check
        %p142 = pneg %p41
      $region26: #{tpu_custom_call.1} parent=23 // pred_check_branch
        %144 = sbr.rel (%p142) target = $region28
      $region27: #{tpu_custom_call.1} parent=23 // pred_region
        %p145 = scmp.lt.s32.totalorder %s16, 1
        %s146 = scalar_select %p145, %s16, 1
        %s147 = smul.addr %s146, 36
        %s148 = smul.addr %s147, 4
        %s149 = scalar_lea.vmem %s0, %s148
      $region28: #{tpu_custom_call.1} parent=23 // pred_fallthru
        _
    $region24: #{tpu_custom_call.1} parent=5 // pred_fallthru
      _
    %p150 = scmp.le.s32.totalorder 1, %s9
    %p151 = scmp.lt.s32.totalorder %s9, 3
    %p152 = pnand %p150, %p151
    %p153 = pneg %p152
    // Predicated region
    $region29: #{tpu_custom_call.1} parent=5 // pred_check
      _
    $region30: #{tpu_custom_call.1} parent=5 // pred_check_branch
      %155 = sbr.rel (%p152) target = $region32
    $region31: #{tpu_custom_call.1} parent=5 // pred_region
      %s156 = ssub.s32 %s9, 1
      %p157 = scmp.lt.s32.totalorder %s18, 1
      %s158 = scalar_select %p157, %s18, 1
      %s159 = smul.addr %s158, 36
      %s160 = smul.addr %s159, 4
      %s161 = scalar_lea.vmem %s0, %s160
      %p162 = pneg %p47
      %p163 = pneg %p44
      %p164 = pneg %p68
      %p165 = pneg %p65
      %p166 = pneg %p89
      %p167 = pneg %p86
      %p168 = pneg %p117
      %p169 = pneg %p114
      %s170 = smul.u32 16, %s19
      %p171 = scmp.lt.s32.totalorder %s18, 1
      %s172 = scalar_select %p171, %s18, 1
      %p173 = scmp.lt.s32.totalorder %s170, 15
      %s174 = scalar_select %p173, %s170, 15
      %s175 = smul.addr %s174, 2
      %s176 = smul.addr %s172, 32
      %s177 = sadd.s32 %s175, %s176
      %s178 = smul.addr %s177, 8
      %s179 = scalar_lea.vmem %s3, %s178
      %p180 = scmp.lt.s32.totalorder %s18, 1
      %s181 = scalar_select %p180, %s18, 1
      %s182 = smul.addr %s181, 36
      %s183 = smul.addr %s182, 4
      %s184 = scalar_lea.vmem %s0, %s183
      %s185 = smul.u32 16, %s19
      %p186 = scmp.lt.s32.totalorder %s18, 1
      %s187 = scalar_select %p186, %s18, 1
      %p188 = scmp.lt.s32.totalorder %s185, 15
      %s189 = scalar_select %p188, %s185, 15
      %s190 = smul.addr %s189, 2
      %s191 = smul.addr %s187, 32
      %s192 = sadd.s32 %s190, %s191
      %s193 = smul.addr %s192, 8
      %s194 = scalar_lea.vmem %s3, %s193
      %s195 = smul.u32 16, %s19
      %s197 = smul.u32 %s19, 16
      %s198 = smul.u32 %s197, 2
      %s199 = smul.addr %s198, 4
      %s200 = scalar_lea.vmem %s184, %s199
      %v201 = vld [vmem:[%s200] sm:$0xf]
      %v202 = vld [vmem:[%s200 + $0x4] sm:$0xf]
      %v203 = vld [vmem:[%s200 + $0x8] sm:$0xf]
      %v204 = vld [vmem:[%s200 + $0xc] sm:$0xf]
      %v205 = vld [vmem:[%s200 + $0x10] sm:$0xf]
      %v206 = vld [vmem:[%s200 + $0x14] sm:$0xf]
      %v207 = vld [vmem:[%s200 + $0x18] sm:$0xf]
      %v208 = vld [vmem:[%s200 + $0x1c] sm:$0xf]
      %v209 = vld [vmem:[%s200 + $0x20] sm:$0xf]
      %v210 = vld [vmem:[%s200 + $0x24] sm:$0xf]
      %v211 = vld [vmem:[%s200 + $0x28] sm:$0xf]
      %v212 = vld [vmem:[%s200 + $0x2c] sm:$0xf]
      %v213 = vld [vmem:[%s200 + $0x30] sm:$0xf]
      %v214 = vld [vmem:[%s200 + $0x34] sm:$0xf]
      %v215 = vld [vmem:[%s200 + $0x38] sm:$0xf]
      %v216 = vld [vmem:[%s200 + $0x3c] sm:$0xf]
      %v217 = vld [vmem:[%s200 + $0x40] sm:$0xf]
      %v218 = vld [vmem:[%s200 + $0x44] sm:$0xf]
      %v219 = vld [vmem:[%s200 + $0x48] sm:$0xf]
      %v220 = vld [vmem:[%s200 + $0x4c] sm:$0xf]
      %v221 = vld [vmem:[%s200 + $0x50] sm:$0xf]
      %v222 = vld [vmem:[%s200 + $0x54] sm:$0xf]
      %v223 = vld [vmem:[%s200 + $0x58] sm:$0xf]
      %v224 = vld [vmem:[%s200 + $0x5c] sm:$0xf]
      %v225 = vld [vmem:[%s200 + $0x60] sm:$0xf]
      %v226 = vld [vmem:[%s200 + $0x64] sm:$0xf]
      %v227 = vld [vmem:[%s200 + $0x68] sm:$0xf]
      %v228 = vld [vmem:[%s200 + $0x6c] sm:$0xf]
      %v229 = vld [vmem:[%s200 + $0x70] sm:$0xf]
      %v230 = vld [vmem:[%s200 + $0x74] sm:$0xf]
      %v231 = vld [vmem:[%s200 + $0x78] sm:$0xf]
      %v232 = vld [vmem:[%s200 + $0x7c] sm:$0xf]
      %v233 = vld [vmem:[%s1] sm:$0xf]
      %v234 = vld [vmem:[%s1 + $0x4] sm:$0x3]
      %s235 = sadd.s32 %s197, 1
      %s236 = smul.u32 %s235, 2
      %s237 = smul.addr %s236, 4
      %s238 = scalar_lea.vmem %s184, %s237
      %v239 = vld [vmem:[%s238] sm:$0xf]
      %v240 = vld [vmem:[%s238 + $0x4] sm:$0xf]
      %v241 = vld [vmem:[%s238 + $0x8] sm:$0xf]
      %v242 = vld [vmem:[%s238 + $0xc] sm:$0xf]
      %v243 = vld [vmem:[%s238 + $0x10] sm:$0xf]
      %v244 = vld [vmem:[%s238 + $0x14] sm:$0xf]
      %v245 = vld [vmem:[%s238 + $0x18] sm:$0xf]
      %v246 = vld [vmem:[%s238 + $0x1c] sm:$0xf]
      %v247 = vld [vmem:[%s238 + $0x20] sm:$0xf]
      %v248 = vld [vmem:[%s238 + $0x24] sm:$0xf]
      %v249 = vld [vmem:[%s238 + $0x28] sm:$0xf]
      %v250 = vld [vmem:[%s238 + $0x2c] sm:$0xf]
      %v251 = vld [vmem:[%s238 + $0x30] sm:$0xf]
      %v252 = vld [vmem:[%s238 + $0x34] sm:$0xf]
      %v253 = vld [vmem:[%s238 + $0x38] sm:$0xf]
      %v254 = vld [vmem:[%s238 + $0x3c] sm:$0xf]
      %v255 = vld [vmem:[%s238 + $0x40] sm:$0xf]
      %v256 = vld [vmem:[%s238 + $0x44] sm:$0xf]
      %v257 = vld [vmem:[%s238 + $0x48] sm:$0xf]
      %v258 = vld [vmem:[%s238 + $0x4c] sm:$0xf]
      %v259 = vld [vmem:[%s238 + $0x50] sm:$0xf]
      %v260 = vld [vmem:[%s238 + $0x54] sm:$0xf]
      %v261 = vld [vmem:[%s238 + $0x58] sm:$0xf]
      %v262 = vld [vmem:[%s238 + $0x5c] sm:$0xf]
      %v263 = vld [vmem:[%s238 + $0x60] sm:$0xf]
      %v264 = vld [vmem:[%s238 + $0x64] sm:$0xf]
      %v265 = vld [vmem:[%s238 + $0x68] sm:$0xf]
      %v266 = vld [vmem:[%s238 + $0x6c] sm:$0xf]
      %v267 = vld [vmem:[%s238 + $0x70] sm:$0xf]
      %v268 = vld [vmem:[%s238 + $0x74] sm:$0xf]
      %v269 = vld [vmem:[%s238 + $0x78] sm:$0xf]
      %v270 = vld [vmem:[%s238 + $0x7c] sm:$0xf]
      %s271 = scalar_lea.vmem %s1, 8
      %v272 = vld [vmem:[%s271] sm:$0xf]
      %v273 = vld [vmem:[%s271 + $0x4] sm:$0x3]
      %v306 = vunpack.c.l.b16 %v239
      %v307 = vunpack.c.l.b16 %v240
      %v308 = vunpack.c.l.b16 %v241
      %v309 = vunpack.c.l.b16 %v242
      %v310 = vunpack.c.l.b16 %v243
      %v311 = vunpack.c.l.b16 %v244
      %v312 = vunpack.c.l.b16 %v245
      %v313 = vunpack.c.l.b16 %v246
      %v314 = vunpack.c.l.b16 %v247
      %v315 = vunpack.c.l.b16 %v248
      %v316 = vunpack.c.l.b16 %v249
      %v317 = vunpack.c.l.b16 %v250
      %v318 = vunpack.c.l.b16 %v251
      %v319 = vunpack.c.l.b16 %v252
      %v320 = vunpack.c.l.b16 %v253
      %v321 = vunpack.c.l.b16 %v254
      %v322 = vunpack.c.l.b16 %v255
      %v323 = vunpack.c.l.b16 %v256
      %v324 = vunpack.c.l.b16 %v257
      %v325 = vunpack.c.l.b16 %v258
      %v326 = vunpack.c.l.b16 %v259
      %v327 = vunpack.c.l.b16 %v260
      %v328 = vunpack.c.l.b16 %v261
      %v329 = vunpack.c.l.b16 %v262
      %v330 = vunpack.c.l.b16 %v263
      %v331 = vunpack.c.l.b16 %v264
      %v332 = vunpack.c.l.b16 %v265
      %v333 = vunpack.c.l.b16 %v266
      %v334 = vunpack.c.l.b16 %v267
      %v335 = vunpack.c.l.b16 %v268
      %v336 = vunpack.c.l.b16 %v269
      %v337 = vunpack.c.l.b16 %v270
      %v338 = vpack.c.b16 %v307, %v306
      %v339 = vpack.c.b16 %v309, %v308
      %v340 = vpack.c.b16 %v311, %v310
      %v341 = vpack.c.b16 %v313, %v312
      %v342 = vpack.c.b16 %v315, %v314
      %v343 = vpack.c.b16 %v317, %v316
      %v344 = vpack.c.b16 %v319, %v318
      %v345 = vpack.c.b16 %v321, %v320
      %v346 = vpack.c.b16 %v323, %v322
      %v347 = vpack.c.b16 %v325, %v324
      %v348 = vpack.c.b16 %v327, %v326
      %v349 = vpack.c.b16 %v329, %v328
      %v350 = vpack.c.b16 %v331, %v330
      %v351 = vpack.c.b16 %v333, %v332
      %v352 = vpack.c.b16 %v335, %v334
      %v353 = vpack.c.b16 %v337, %v336
      %v356 = vunpack.c.l.b16 %v272
      %v357 = vunpack.c.l.b16 %v273
      %v358 = vpack.c.b16 %v357, %v356
      %vm359 = vcmask 97280
      %v361 = vsel %vm359, %v338, 0
      %v364 = vsel %vm359, %v339, 0
      %v367 = vsel %vm359, %v340, 0
      %v370 = vsel %vm359, %v341, 0
      %v373 = vsel %vm359, %v342, 0
      %v376 = vsel %vm359, %v343, 0
      %v379 = vsel %vm359, %v344, 0
      %v382 = vsel %vm359, %v345, 0
      %v385 = vsel %vm359, %v346, 0
      %v388 = vsel %vm359, %v347, 0
      %v391 = vsel %vm359, %v348, 0
      %v394 = vsel %vm359, %v349, 0
      %v397 = vsel %vm359, %v350, 0
      %v400 = vsel %vm359, %v351, 0
      %v403 = vsel %vm359, %v352, 0
      %v406 = vsel %vm359, %v353, 0
      %vm408 = vcmask 1045504
      %v410 = vsel %vm408, %v358, 0
      %412 = vmatpush.bf16.msra.mxu0 0
      %413 = vmatpush.bf16.msra.mxu0 0
      %414 = vmatpush.bf16.msra.mxu0 0
      %415 = vmatpush.bf16.msra.mxu0 0
      %416 = vmatpush.bf16.msra.mxu0 0
      %417 = vmatpush.bf16.msra.mxu0 0
      %418 = vmatpush.bf16.msra.mxu0 0
      %419 = vmatpush.bf16.msra.mxu0 %v410
      %420 = vmatmul.bf16.gmra.mxu0 %v361
      %v421 = vpop.f32.mrf.mxu0
      %v422 = vadd.f32 0.0, %v421
      %v423 = vpop.f32.mrf.mxu0
      %v424 = vadd.f32 0.0, %v423
      %425 = vmatmul.bf16.gmra.mxu0 %v364
      %v426 = vpop.f32.mrf.mxu0
      %v427 = vadd.f32 0.0, %v426
      %v428 = vpop.f32.mrf.mxu0
      %v429 = vadd.f32 0.0, %v428
      %430 = vmatmul.bf16.gmra.mxu0 %v367
      %v431 = vpop.f32.mrf.mxu0
      %v432 = vadd.f32 0.0, %v431
      %v433 = vpop.f32.mrf.mxu0
      %v434 = vadd.f32 0.0, %v433
      %435 = vmatmul.bf16.gmra.mxu0 %v370
      %v436 = vpop.f32.mrf.mxu0
      %v437 = vadd.f32 0.0, %v436
      %v438 = vpop.f32.mrf.mxu0
      %v439 = vadd.f32 0.0, %v438
      %440 = vmatmul.bf16.gmra.mxu0 %v373
      %v441 = vpop.f32.mrf.mxu0
      %v442 = vadd.f32 0.0, %v441
      %v443 = vpop.f32.mrf.mxu0
      %v444 = vadd.f32 0.0, %v443
      %445 = vmatmul.bf16.gmra.mxu0 %v376
      %v446 = vpop.f32.mrf.mxu0
      %v447 = vadd.f32 0.0, %v446
      %v448 = vpop.f32.mrf.mxu0
      %v449 = vadd.f32 0.0, %v448
      %450 = vmatmul.bf16.gmra.mxu0 %v379
      %v451 = vpop.f32.mrf.mxu0
      %v452 = vadd.f32 0.0, %v451
      %v453 = vpop.f32.mrf.mxu0
      %v454 = vadd.f32 0.0, %v453
      %455 = vmatmul.bf16.gmra.mxu0 %v382
      %v456 = vpop.f32.mrf.mxu0
      %v457 = vadd.f32 0.0, %v456
      %v458 = vpop.f32.mrf.mxu0
      %v459 = vadd.f32 0.0, %v458
      %460 = vmatmul.bf16.gmra.mxu0 %v385
      %v461 = vpop.f32.mrf.mxu0
      %v462 = vadd.f32 0.0, %v461
      %v463 = vpop.f32.mrf.mxu0
      %v464 = vadd.f32 0.0, %v463
      %465 = vmatmul.bf16.gmra.mxu0 %v388
      %v466 = vpop.f32.mrf.mxu0
      %v467 = vadd.f32 0.0, %v466
      %v468 = vpop.f32.mrf.mxu0
      %v469 = vadd.f32 0.0, %v468
      %470 = vmatmul.bf16.gmra.mxu0 %v391
      %v471 = vpop.f32.mrf.mxu0
      %v472 = vadd.f32 0.0, %v471
      %v473 = vpop.f32.mrf.mxu0
      %v474 = vadd.f32 0.0, %v473
      %475 = vmatmul.bf16.gmra.mxu0 %v394
      %v476 = vpop.f32.mrf.mxu0
      %v477 = vadd.f32 0.0, %v476
      %v478 = vpop.f32.mrf.mxu0
      %v479 = vadd.f32 0.0, %v478
      %480 = vmatmul.bf16.gmra.mxu0 %v397
      %v481 = vpop.f32.mrf.mxu0
      %v482 = vadd.f32 0.0, %v481
      %v483 = vpop.f32.mrf.mxu0
      %v484 = vadd.f32 0.0, %v483
      %485 = vmatmul.bf16.gmra.mxu0 %v400
      %v486 = vpop.f32.mrf.mxu0
      %v487 = vadd.f32 0.0, %v486
      %v488 = vpop.f32.mrf.mxu0
      %v489 = vadd.f32 0.0, %v488
      %490 = vmatmul.bf16.gmra.mxu0 %v403
      %v491 = vpop.f32.mrf.mxu0
      %v492 = vadd.f32 0.0, %v491
      %v493 = vpop.f32.mrf.mxu0
      %v494 = vadd.f32 0.0, %v493
      %495 = vmatmul.bf16.gmra.mxu0 %v406
      %v496 = vpop.f32.mrf.mxu0
      %v497 = vadd.f32 0.0, %v496
      %v498 = vpop.f32.mrf.mxu0
      %v499 = vadd.f32 0.0, %v498
      %500 = vdwg.mxu0
      %v533 = vunpack.c.l.b16 %v201
      %v534 = vunpack.c.l.b16 %v202
      %v535 = vunpack.c.l.b16 %v203
      %v536 = vunpack.c.l.b16 %v204
      %v537 = vunpack.c.l.b16 %v205
      %v538 = vunpack.c.l.b16 %v206
      %v539 = vunpack.c.l.b16 %v207
      %v540 = vunpack.c.l.b16 %v208
      %v541 = vunpack.c.l.b16 %v209
      %v542 = vunpack.c.l.b16 %v210
      %v543 = vunpack.c.l.b16 %v211
      %v544 = vunpack.c.l.b16 %v212
      %v545 = vunpack.c.l.b16 %v213
      %v546 = vunpack.c.l.b16 %v214
      %v547 = vunpack.c.l.b16 %v215
      %v548 = vunpack.c.l.b16 %v216
      %v549 = vunpack.c.l.b16 %v217
      %v550 = vunpack.c.l.b16 %v218
      %v551 = vunpack.c.l.b16 %v219
      %v552 = vunpack.c.l.b16 %v220
      %v553 = vunpack.c.l.b16 %v221
      %v554 = vunpack.c.l.b16 %v222
      %v555 = vunpack.c.l.b16 %v223
      %v556 = vunpack.c.l.b16 %v224
      %v557 = vunpack.c.l.b16 %v225
      %v558 = vunpack.c.l.b16 %v226
      %v559 = vunpack.c.l.b16 %v227
      %v560 = vunpack.c.l.b16 %v228
      %v561 = vunpack.c.l.b16 %v229
      %v562 = vunpack.c.l.b16 %v230
      %v563 = vunpack.c.l.b16 %v231
      %v564 = vunpack.c.l.b16 %v232
      %v565 = vpack.c.b16 %v534, %v533
      %v566 = vpack.c.b16 %v536, %v535
      %v567 = vpack.c.b16 %v538, %v537
      %v568 = vpack.c.b16 %v540, %v539
      %v569 = vpack.c.b16 %v542, %v541
      %v570 = vpack.c.b16 %v544, %v543
      %v571 = vpack.c.b16 %v546, %v545
      %v572 = vpack.c.b16 %v548, %v547
      %v573 = vpack.c.b16 %v550, %v549
      %v574 = vpack.c.b16 %v552, %v551
      %v575 = vpack.c.b16 %v554, %v553
      %v576 = vpack.c.b16 %v556, %v555
      %v577 = vpack.c.b16 %v558, %v557
      %v578 = vpack.c.b16 %v560, %v559
      %v579 = vpack.c.b16 %v562, %v561
      %v580 = vpack.c.b16 %v564, %v563
      %v583 = vunpack.c.l.b16 %v233
      %v584 = vunpack.c.l.b16 %v234
      %v585 = vpack.c.b16 %v584, %v583
      %v587 = vsel %vm359, %v565, 0
      %v590 = vsel %vm359, %v566, 0
      %v593 = vsel %vm359, %v567, 0
      %v596 = vsel %vm359, %v568, 0
      %v599 = vsel %vm359, %v569, 0
      %v602 = vsel %vm359, %v570, 0
      %v605 = vsel %vm359, %v571, 0
      %v608 = vsel %vm359, %v572, 0
      %v611 = vsel %vm359, %v573, 0
      %v614 = vsel %vm359, %v574, 0
      %v617 = vsel %vm359, %v575, 0
      %v620 = vsel %vm359, %v576, 0
      %v623 = vsel %vm359, %v577, 0
      %v626 = vsel %vm359, %v578, 0
      %v629 = vsel %vm359, %v579, 0
      %v632 = vsel %vm359, %v580, 0
      %v635 = vsel %vm408, %v585, 0
      %637 = vmatpush.bf16.msra.mxu0 0
      %638 = vmatpush.bf16.msra.mxu0 0
      %639 = vmatpush.bf16.msra.mxu0 0
      %640 = vmatpush.bf16.msra.mxu0 0
      %641 = vmatpush.bf16.msra.mxu0 0
      %642 = vmatpush.bf16.msra.mxu0 0
      %643 = vmatpush.bf16.msra.mxu0 0
      %644 = vmatpush.bf16.msra.mxu0 %v635
      %645 = vmatmul.bf16.gmra.mxu0 %v587
      %v646 = vpop.f32.mrf.mxu0
      %v647 = vadd.f32 %v422, %v646
      %v648 = vpop.f32.mrf.mxu0
      %v649 = vadd.f32 %v424, %v648
      %650 = vmatmul.bf16.gmra.mxu0 %v590
      %v651 = vpop.f32.mrf.mxu0
      %v652 = vadd.f32 %v427, %v651
      %v653 = vpop.f32.mrf.mxu0
      %v654 = vadd.f32 %v429, %v653
      %655 = vmatmul.bf16.gmra.mxu0 %v593
      %v656 = vpop.f32.mrf.mxu0
      %v657 = vadd.f32 %v432, %v656
      %v658 = vpop.f32.mrf.mxu0
      %v659 = vadd.f32 %v434, %v658
      %660 = vmatmul.bf16.gmra.mxu0 %v596
      %v661 = vpop.f32.mrf.mxu0
      %v662 = vadd.f32 %v437, %v661
      %v663 = vpop.f32.mrf.mxu0
      %v664 = vadd.f32 %v439, %v663
      %665 = vmatmul.bf16.gmra.mxu0 %v599
      %v666 = vpop.f32.mrf.mxu0
      %v667 = vadd.f32 %v442, %v666
      %v668 = vpop.f32.mrf.mxu0
      %v669 = vadd.f32 %v444, %v668
      %670 = vmatmul.bf16.gmra.mxu0 %v602
      %v671 = vpop.f32.mrf.mxu0
      %v672 = vadd.f32 %v447, %v671
      %v673 = vpop.f32.mrf.mxu0
      %v674 = vadd.f32 %v449, %v673
      %675 = vmatmul.bf16.gmra.mxu0 %v605
      %v676 = vpop.f32.mrf.mxu0
      %v677 = vadd.f32 %v452, %v676
      %v678 = vpop.f32.mrf.mxu0
      %v679 = vadd.f32 %v454, %v678
      %680 = vmatmul.bf16.gmra.mxu0 %v608
      %v681 = vpop.f32.mrf.mxu0
      %v682 = vadd.f32 %v457, %v681
      %v683 = vpop.f32.mrf.mxu0
      %v684 = vadd.f32 %v459, %v683
      %685 = vmatmul.bf16.gmra.mxu0 %v611
      %v686 = vpop.f32.mrf.mxu0
      %v687 = vadd.f32 %v462, %v686
      %v688 = vpop.f32.mrf.mxu0
      %v689 = vadd.f32 %v464, %v688
      %690 = vmatmul.bf16.gmra.mxu0 %v614
      %v691 = vpop.f32.mrf.mxu0
      %v692 = vadd.f32 %v467, %v691
      %v693 = vpop.f32.mrf.mxu0
      %v694 = vadd.f32 %v469, %v693
      %695 = vmatmul.bf16.gmra.mxu0 %v617
      %v696 = vpop.f32.mrf.mxu0
      %v697 = vadd.f32 %v472, %v696
      %v698 = vpop.f32.mrf.mxu0
      %v699 = vadd.f32 %v474, %v698
      %700 = vmatmul.bf16.gmra.mxu0 %v620
      %v701 = vpop.f32.mrf.mxu0
      %v702 = vadd.f32 %v477, %v701
      %v703 = vpop.f32.mrf.mxu0
      %v704 = vadd.f32 %v479, %v703
      %705 = vmatmul.bf16.gmra.mxu0 %v623
      %v706 = vpop.f32.mrf.mxu0
      %v707 = vadd.f32 %v482, %v706
      %v708 = vpop.f32.mrf.mxu0
      %v709 = vadd.f32 %v484, %v708
      %710 = vmatmul.bf16.gmra.mxu0 %v626
      %v711 = vpop.f32.mrf.mxu0
      %v712 = vadd.f32 %v487, %v711
      %v713 = vpop.f32.mrf.mxu0
      %v714 = vadd.f32 %v489, %v713
      %715 = vmatmul.bf16.gmra.mxu0 %v629
      %v716 = vpop.f32.mrf.mxu0
      %v717 = vadd.f32 %v492, %v716
      %v718 = vpop.f32.mrf.mxu0
      %v719 = vadd.f32 %v494, %v718
      %720 = vmatmul.bf16.gmra.mxu0 %v632
      %v721 = vpop.f32.mrf.mxu0
      %v722 = vadd.f32 %v497, %v721
      %v723 = vpop.f32.mrf.mxu0
      %v724 = vadd.f32 %v499, %v723
      %725 = vdwg.mxu0
      %s726 = sadd.s32 %s197, 2
      %s727 = smul.u32 %s726, 2
      %s728 = smul.addr %s727, 4
      %s729 = scalar_lea.vmem %s184, %s728
      %v730 = vld [vmem:[%s729] sm:$0xf]
      %v731 = vld [vmem:[%s729 + $0x4] sm:$0xf]
      %v732 = vld [vmem:[%s729 + $0x8] sm:$0xf]
      %v733 = vld [vmem:[%s729 + $0xc] sm:$0xf]
      %v734 = vld [vmem:[%s729 + $0x10] sm:$0xf]
      %v735 = vld [vmem:[%s729 + $0x14] sm:$0xf]
      %v736 = vld [vmem:[%s729 + $0x18] sm:$0xf]
      %v737 = vld [vmem:[%s729 + $0x1c] sm:$0xf]
      %v738 = vld [vmem:[%s729 + $0x20] sm:$0xf]
      %v739 = vld [vmem:[%s729 + $0x24] sm:$0xf]
      %v740 = vld [vmem:[%s729 + $0x28] sm:$0xf]
      %v741 = vld [vmem:[%s729 + $0x2c] sm:$0xf]
      %v742 = vld [vmem:[%s729 + $0x30] sm:$0xf]
      %v743 = vld [vmem:[%s729 + $0x34] sm:$0xf]
      %v744 = vld [vmem:[%s729 + $0x38] sm:$0xf]
      %v745 = vld [vmem:[%s729 + $0x3c] sm:$0xf]
      %v746 = vld [vmem:[%s729 + $0x40] sm:$0xf]
      %v747 = vld [vmem:[%s729 + $0x44] sm:$0xf]
      %v748 = vld [vmem:[%s729 + $0x48] sm:$0xf]
      %v749 = vld [vmem:[%s729 + $0x4c] sm:$0xf]
      %v750 = vld [vmem:[%s729 + $0x50] sm:$0xf]
      %v751 = vld [vmem:[%s729 + $0x54] sm:$0xf]
      %v752 = vld [vmem:[%s729 + $0x58] sm:$0xf]
      %v753 = vld [vmem:[%s729 + $0x5c] sm:$0xf]
      %v754 = vld [vmem:[%s729 + $0x60] sm:$0xf]
      %v755 = vld [vmem:[%s729 + $0x64] sm:$0xf]
      %v756 = vld [vmem:[%s729 + $0x68] sm:$0xf]
      %v757 = vld [vmem:[%s729 + $0x6c] sm:$0xf]
      %v758 = vld [vmem:[%s729 + $0x70] sm:$0xf]
      %v759 = vld [vmem:[%s729 + $0x74] sm:$0xf]
      %v760 = vld [vmem:[%s729 + $0x78] sm:$0xf]
      %v761 = vld [vmem:[%s729 + $0x7c] sm:$0xf]
      %s762 = scalar_lea.vmem %s1, 16
      %v763 = vld [vmem:[%s762] sm:$0xf]
      %v764 = vld [vmem:[%s762 + $0x4] sm:$0x3]
      %v797 = vunpack.c.l.b16 %v730
      %v798 = vunpack.c.l.b16 %v731
      %v799 = vunpack.c.l.b16 %v732
      %v800 = vunpack.c.l.b16 %v733
      %v801 = vunpack.c.l.b16 %v734
      %v802 = vunpack.c.l.b16 %v735
      %v803 = vunpack.c.l.b16 %v736
      %v804 = vunpack.c.l.b16 %v737
      %v805 = vunpack.c.l.b16 %v738
      %v806 = vunpack.c.l.b16 %v739
      %v807 = vunpack.c.l.b16 %v740
      %v808 = vunpack.c.l.b16 %v741
      %v809 = vunpack.c.l.b16 %v742
      %v810 = vunpack.c.l.b16 %v743
      %v811 = vunpack.c.l.b16 %v744
      %v812 = vunpack.c.l.b16 %v745
      %v813 = vunpack.c.l.b16 %v746
      %v814 = vunpack.c.l.b16 %v747
      %v815 = vunpack.c.l.b16 %v748
      %v816 = vunpack.c.l.b16 %v749
      %v817 = vunpack.c.l.b16 %v750
      %v818 = vunpack.c.l.b16 %v751
      %v819 = vunpack.c.l.b16 %v752
      %v820 = vunpack.c.l.b16 %v753
      %v821 = vunpack.c.l.b16 %v754
      %v822 = vunpack.c.l.b16 %v755
      %v823 = vunpack.c.l.b16 %v756
      %v824 = vunpack.c.l.b16 %v757
      %v825 = vunpack.c.l.b16 %v758
      %v826 = vunpack.c.l.b16 %v759
      %v827 = vunpack.c.l.b16 %v760
      %v828 = vunpack.c.l.b16 %v761
      %v829 = vpack.c.b16 %v798, %v797
      %v830 = vpack.c.b16 %v800, %v799
      %v831 = vpack.c.b16 %v802, %v801
      %v832 = vpack.c.b16 %v804, %v803
      %v833 = vpack.c.b16 %v806, %v805
      %v834 = vpack.c.b16 %v808, %v807
      %v835 = vpack.c.b16 %v810, %v809
      %v836 = vpack.c.b16 %v812, %v811
      %v837 = vpack.c.b16 %v814, %v813
      %v838 = vpack.c.b16 %v816, %v815
      %v839 = vpack.c.b16 %v818, %v817
      %v840 = vpack.c.b16 %v820, %v819
      %v841 = vpack.c.b16 %v822, %v821
      %v842 = vpack.c.b16 %v824, %v823
      %v843 = vpack.c.b16 %v826, %v825
      %v844 = vpack.c.b16 %v828, %v827
      %v847 = vunpack.c.l.b16 %v763
      %v848 = vunpack.c.l.b16 %v764
      %v849 = vpack.c.b16 %v848, %v847
      %v851 = vsel %vm359, %v829, 0
      %v854 = vsel %vm359, %v830, 0
      %v857 = vsel %vm359, %v831, 0
      %v860 = vsel %vm359, %v832, 0
      %v863 = vsel %vm359, %v833, 0
      %v866 = vsel %vm359, %v834, 0
      %v869 = vsel %vm359, %v835, 0
      %v872 = vsel %vm359, %v836, 0
      %v875 = vsel %vm359, %v837, 0
      %v878 = vsel %vm359, %v838, 0
      %v881 = vsel %vm359, %v839, 0
      %v884 = vsel %vm359, %v840, 0
      %v887 = vsel %vm359, %v841, 0
      %v890 = vsel %vm359, %v842, 0
      %v893 = vsel %vm359, %v843, 0
      %v896 = vsel %vm359, %v844, 0
      %v899 = vsel %vm408, %v849, 0
      %901 = vmatpush.bf16.msra.mxu0 0
      %902 = vmatpush.bf16.msra.mxu0 0
      %903 = vmatpush.bf16.msra.mxu0 0
      %904 = vmatpush.bf16.msra.mxu0 0
      %905 = vmatpush.bf16.msra.mxu0 0
      %906 = vmatpush.bf16.msra.mxu0 0
      %907 = vmatpush.bf16.msra.mxu0 0
      %908 = vmatpush.bf16.msra.mxu0 %v899
      %909 = vmatmul.bf16.gmra.mxu0 %v851
      %v910 = vpop.f32.mrf.mxu0
      %v911 = vadd.f32 0.0, %v910
      %v912 = vpop.f32.mrf.mxu0
      %v913 = vadd.f32 0.0, %v912
      %914 = vmatmul.bf16.gmra.mxu0 %v854
      %v915 = vpop.f32.mrf.mxu0
      %v916 = vadd.f32 0.0, %v915
      %v917 = vpop.f32.mrf.mxu0
      %v918 = vadd.f32 0.0, %v917
      %919 = vmatmul.bf16.gmra.mxu0 %v857
      %v920 = vpop.f32.mrf.mxu0
      %v921 = vadd.f32 0.0, %v920
      %v922 = vpop.f32.mrf.mxu0
      %v923 = vadd.f32 0.0, %v922
      %924 = vmatmul.bf16.gmra.mxu0 %v860
      %v925 = vpop.f32.mrf.mxu0
      %v926 = vadd.f32 0.0, %v925
      %v927 = vpop.f32.mrf.mxu0
      %v928 = vadd.f32 0.0, %v927
      %929 = vmatmul.bf16.gmra.mxu0 %v863
      %v930 = vpop.f32.mrf.mxu0
      %v931 = vadd.f32 0.0, %v930
      %v932 = vpop.f32.mrf.mxu0
      %v933 = vadd.f32 0.0, %v932
      %934 = vmatmul.bf16.gmra.mxu0 %v866
      %v935 = vpop.f32.mrf.mxu0
      %v936 = vadd.f32 0.0, %v935
      %v937 = vpop.f32.mrf.mxu0
      %v938 = vadd.f32 0.0, %v937
      %939 = vmatmul.bf16.gmra.mxu0 %v869
      %v940 = vpop.f32.mrf.mxu0
      %v941 = vadd.f32 0.0, %v940
      %v942 = vpop.f32.mrf.mxu0
      %v943 = vadd.f32 0.0, %v942
      %944 = vmatmul.bf16.gmra.mxu0 %v872
      %v945 = vpop.f32.mrf.mxu0
      %v946 = vadd.f32 0.0, %v945
      %v947 = vpop.f32.mrf.mxu0
      %v948 = vadd.f32 0.0, %v947
      %949 = vmatmul.bf16.gmra.mxu0 %v875
      %v950 = vpop.f32.mrf.mxu0
      %v951 = vadd.f32 0.0, %v950
      %v952 = vpop.f32.mrf.mxu0
      %v953 = vadd.f32 0.0, %v952
      %954 = vmatmul.bf16.gmra.mxu0 %v878
      %v955 = vpop.f32.mrf.mxu0
      %v956 = vadd.f32 0.0, %v955
      %v957 = vpop.f32.mrf.mxu0
      %v958 = vadd.f32 0.0, %v957
      %959 = vmatmul.bf16.gmra.mxu0 %v881
      %v960 = vpop.f32.mrf.mxu0
      %v961 = vadd.f32 0.0, %v960
      %v962 = vpop.f32.mrf.mxu0
      %v963 = vadd.f32 0.0, %v962
      %964 = vmatmul.bf16.gmra.mxu0 %v884
      %v965 = vpop.f32.mrf.mxu0
      %v966 = vadd.f32 0.0, %v965
      %v967 = vpop.f32.mrf.mxu0
      %v968 = vadd.f32 0.0, %v967
      %969 = vmatmul.bf16.gmra.mxu0 %v887
      %v970 = vpop.f32.mrf.mxu0
      %v971 = vadd.f32 0.0, %v970
      %v972 = vpop.f32.mrf.mxu0
      %v973 = vadd.f32 0.0, %v972
      %974 = vmatmul.bf16.gmra.mxu0 %v890
      %v975 = vpop.f32.mrf.mxu0
      %v976 = vadd.f32 0.0, %v975
      %v977 = vpop.f32.mrf.mxu0
      %v978 = vadd.f32 0.0, %v977
      %979 = vmatmul.bf16.gmra.mxu0 %v893
      %v980 = vpop.f32.mrf.mxu0
      %v981 = vadd.f32 0.0, %v980
      %v982 = vpop.f32.mrf.mxu0
      %v983 = vadd.f32 0.0, %v982
      %984 = vmatmul.bf16.gmra.mxu0 %v896
      %v985 = vpop.f32.mrf.mxu0
      %v986 = vadd.f32 0.0, %v985
      %v987 = vpop.f32.mrf.mxu0
      %v988 = vadd.f32 0.0, %v987
      %989 = vdwg.mxu0
      %v990 = vadd.f32 %v647, %v911
      %v991 = vadd.f32 %v649, %v913
      %v992 = vadd.f32 %v652, %v916
      %v993 = vadd.f32 %v654, %v918
      %v994 = vadd.f32 %v657, %v921
      %v995 = vadd.f32 %v659, %v923
      %v996 = vadd.f32 %v662, %v926
      %v997 = vadd.f32 %v664, %v928
      %v998 = vadd.f32 %v667, %v931
      %v999 = vadd.f32 %v669, %v933
      %v1000 = vadd.f32 %v672, %v936
      %v1001 = vadd.f32 %v674, %v938
      %v1002 = vadd.f32 %v677, %v941
      %v1003 = vadd.f32 %v679, %v943
      %v1004 = vadd.f32 %v682, %v946
      %v1005 = vadd.f32 %v684, %v948
      %v1006 = vadd.f32 %v687, %v951
      %v1007 = vadd.f32 %v689, %v953
      %v1008 = vadd.f32 %v692, %v956
      %v1009 = vadd.f32 %v694, %v958
      %v1010 = vadd.f32 %v697, %v961
      %v1011 = vadd.f32 %v699, %v963
      %v1012 = vadd.f32 %v702, %v966
      %v1013 = vadd.f32 %v704, %v968
      %v1014 = vadd.f32 %v707, %v971
      %v1015 = vadd.f32 %v709, %v973
      %v1016 = vadd.f32 %v712, %v976
      %v1017 = vadd.f32 %v714, %v978
      %v1018 = vadd.f32 %v717, %v981
      %v1019 = vadd.f32 %v719, %v983
      %v1020 = vadd.f32 %v722, %v986
      %v1021 = vadd.f32 %v724, %v988
      %v1022 = vld [vmem:[%s2 + $0x1] sm:$0x1]
      %v1023 = vperm.slane %v1022, 0
      %v1024 = vadd.f32 %v990, %v1023
      %v1025 = vadd.f32 %v991, %v1023
      %v1026 = vadd.f32 %v992, %v1023
      %v1027 = vadd.f32 %v993, %v1023
      %v1028 = vadd.f32 %v994, %v1023
      %v1029 = vadd.f32 %v995, %v1023
      %v1030 = vadd.f32 %v996, %v1023
      %v1031 = vadd.f32 %v997, %v1023
      %v1032 = vadd.f32 %v998, %v1023
      %v1033 = vadd.f32 %v999, %v1023
      %v1034 = vadd.f32 %v1000, %v1023
      %v1035 = vadd.f32 %v1001, %v1023
      %v1036 = vadd.f32 %v1002, %v1023
      %v1037 = vadd.f32 %v1003, %v1023
      %v1038 = vadd.f32 %v1004, %v1023
      %v1039 = vadd.f32 %v1005, %v1023
      %v1040 = vadd.f32 %v1006, %v1023
      %v1041 = vadd.f32 %v1007, %v1023
      %v1042 = vadd.f32 %v1008, %v1023
      %v1043 = vadd.f32 %v1009, %v1023
      %v1044 = vadd.f32 %v1010, %v1023
      %v1045 = vadd.f32 %v1011, %v1023
      %v1046 = vadd.f32 %v1012, %v1023
      %v1047 = vadd.f32 %v1013, %v1023
      %v1048 = vadd.f32 %v1014, %v1023
      %v1049 = vadd.f32 %v1015, %v1023
      %v1050 = vadd.f32 %v1016, %v1023
      %v1051 = vadd.f32 %v1017, %v1023
      %v1052 = vadd.f32 %v1018, %v1023
      %v1053 = vadd.f32 %v1019, %v1023
      %v1054 = vadd.f32 %v1020, %v1023
      %v1055 = vadd.f32 %v1021, %v1023
      %v1056 = vmax.f32 %v1024, 0.0
      %v1057 = vmax.f32 %v1025, 0.0
      %v1058 = vmax.f32 %v1026, 0.0
      %v1059 = vmax.f32 %v1027, 0.0
      %v1060 = vmax.f32 %v1028, 0.0
      %v1061 = vmax.f32 %v1029, 0.0
      %v1062 = vmax.f32 %v1030, 0.0
      %v1063 = vmax.f32 %v1031, 0.0
      %v1064 = vmax.f32 %v1032, 0.0
      %v1065 = vmax.f32 %v1033, 0.0
      %v1066 = vmax.f32 %v1034, 0.0
      %v1067 = vmax.f32 %v1035, 0.0
      %v1068 = vmax.f32 %v1036, 0.0
      %v1069 = vmax.f32 %v1037, 0.0
      %v1070 = vmax.f32 %v1038, 0.0
      %v1071 = vmax.f32 %v1039, 0.0
      %v1072 = vmax.f32 %v1040, 0.0
      %v1073 = vmax.f32 %v1041, 0.0
      %v1074 = vmax.f32 %v1042, 0.0
      %v1075 = vmax.f32 %v1043, 0.0
      %v1076 = vmax.f32 %v1044, 0.0
      %v1077 = vmax.f32 %v1045, 0.0
      %v1078 = vmax.f32 %v1046, 0.0
      %v1079 = vmax.f32 %v1047, 0.0
      %v1080 = vmax.f32 %v1048, 0.0
      %v1081 = vmax.f32 %v1049, 0.0
      %v1082 = vmax.f32 %v1050, 0.0
      %v1083 = vmax.f32 %v1051, 0.0
      %v1084 = vmax.f32 %v1052, 0.0
      %v1085 = vmax.f32 %v1053, 0.0
      %v1086 = vmax.f32 %v1054, 0.0
      %v1087 = vmax.f32 %v1055, 0.0
      %vm1088 = vcmask 64512
      %1089 = vst.msk [vmem:[%s194] sm:$0xff] %vm1088, %v1056
      %1090 = vst.msk [vmem:[%s194 + $0x8] sm:$0xff] %vm1088, %v1057
      %1091 = vst.msk [vmem:[%s194 + $0x10] sm:$0xff] %vm1088, %v1058
      %1092 = vst.msk [vmem:[%s194 + $0x18] sm:$0xff] %vm1088, %v1059
      %1093 = vst.msk [vmem:[%s194 + $0x20] sm:$0xff] %vm1088, %v1060
      %1094 = vst.msk [vmem:[%s194 + $0x28] sm:$0xff] %vm1088, %v1061
      %1095 = vst.msk [vmem:[%s194 + $0x30] sm:$0xff] %vm1088, %v1062
      %1096 = vst.msk [vmem:[%s194 + $0x38] sm:$0xff] %vm1088, %v1063
      %1097 = vst.msk [vmem:[%s194 + $0x40] sm:$0xff] %vm1088, %v1064
      %1098 = vst.msk [vmem:[%s194 + $0x48] sm:$0xff] %vm1088, %v1065
      %1099 = vst.msk [vmem:[%s194 + $0x50] sm:$0xff] %vm1088, %v1066
      %1100 = vst.msk [vmem:[%s194 + $0x58] sm:$0xff] %vm1088, %v1067
      %1101 = vst.msk [vmem:[%s194 + $0x60] sm:$0xff] %vm1088, %v1068
      %1102 = vst.msk [vmem:[%s194 + $0x68] sm:$0xff] %vm1088, %v1069
      %1103 = vst.msk [vmem:[%s194 + $0x70] sm:$0xff] %vm1088, %v1070
      %1104 = vst.msk [vmem:[%s194 + $0x78] sm:$0xff] %vm1088, %v1071
      %1105 = vst.msk [vmem:[%s194 + $0x80] sm:$0xff] %vm1088, %v1072
      %1106 = vst.msk [vmem:[%s194 + $0x88] sm:$0xff] %vm1088, %v1073
      %1107 = vst.msk [vmem:[%s194 + $0x90] sm:$0xff] %vm1088, %v1074
      %1108 = vst.msk [vmem:[%s194 + $0x98] sm:$0xff] %vm1088, %v1075
      %1109 = vst.msk [vmem:[%s194 + $0xa0] sm:$0xff] %vm1088, %v1076
      %1110 = vst.msk [vmem:[%s194 + $0xa8] sm:$0xff] %vm1088, %v1077
      %1111 = vst.msk [vmem:[%s194 + $0xb0] sm:$0xff] %vm1088, %v1078
      %1112 = vst.msk [vmem:[%s194 + $0xb8] sm:$0xff] %vm1088, %v1079
      %1113 = vst.msk [vmem:[%s194 + $0xc0] sm:$0xff] %vm1088, %v1080
      %1114 = vst.msk [vmem:[%s194 + $0xc8] sm:$0xff] %vm1088, %v1081
      %1115 = vst.msk [vmem:[%s194 + $0xd0] sm:$0xff] %vm1088, %v1082
      %1116 = vst.msk [vmem:[%s194 + $0xd8] sm:$0xff] %vm1088, %v1083
      %1117 = vst.msk [vmem:[%s194 + $0xe0] sm:$0xff] %vm1088, %v1084
      %1118 = vst.msk [vmem:[%s194 + $0xe8] sm:$0xff] %vm1088, %v1085
      %1119 = vst.msk [vmem:[%s194 + $0xf0] sm:$0xff] %vm1088, %v1086
      %1120 = vst.msk [vmem:[%s194 + $0xf8] sm:$0xff] %vm1088, %v1087
      %s1121 = smul.u32 16, %s19
      %p1122 = scmp.lt.s32.totalorder %s18, 1
      %s1123 = scalar_select %p1122, %s18, 1
      %p1124 = scmp.lt.s32.totalorder %s1121, 15
      %s1125 = scalar_select %p1124, %s1121, 15
      %s1126 = smul.addr %s1125, 2
      %s1127 = smul.addr %s1123, 32
      %s1128 = sadd.s32 %s1126, %s1127
      %s1129 = smul.addr %s1128, 8
      %s1130 = scalar_lea.vmem %s3, %s1129
      // Predicated region
      $region33: #{tpu_custom_call.1} parent=31 // pred_check
        %p1131 = pneg %p114
      $region34: #{tpu_custom_call.1} parent=31 // pred_check_branch
        %1133 = sbr.rel (%p1131) target = $region36
      $region35: #{tpu_custom_call.1} parent=31 // pred_region
        %s1134 = smul.u32 16, %s19
      $region36: #{tpu_custom_call.1} parent=31 // pred_fallthru
        _
    $region32: #{tpu_custom_call.1} parent=5 // pred_fallthru
      _
    %p1135 = scmp.le.s32.totalorder 2, %s9
    // Predicated region
    $region37: #{tpu_custom_call.1} parent=5 // pred_check
      %p1136 = pneg %p1135
    $region38: #{tpu_custom_call.1} parent=5 // pred_check_branch
      %1138 = sbr.rel (%p1136) target = $region40
    $region39: #{tpu_custom_call.1} parent=5 // pred_region
      %s1139 = ssub.s32 %s9, 2
      // Predicated region
      $region41: #{tpu_custom_call.1} parent=39 // pred_check
        %p1140 = pneg %p120
      $region42: #{tpu_custom_call.1} parent=39 // pred_check_branch
        %1142 = sbr.rel (%p1140) target = $region44
      $region43: #{tpu_custom_call.1} parent=39 // pred_region
        %s1143 = smul.u32 16, %s21
        %p1144 = scmp.lt.s32.totalorder %s20, 1
        %s1145 = scalar_select %p1144, %s20, 1
        %p1146 = scmp.lt.s32.totalorder %s1143, 15
        %s1147 = scalar_select %p1146, %s1143, 15
        %s1148 = smul.addr %s1147, 2
        %s1149 = smul.addr %s1145, 32
        %s1150 = sadd.s32 %s1148, %s1149
        %s1151 = smul.addr %s1150, 8
        %s1152 = scalar_lea.vmem %s3, %s1151
      $region44: #{tpu_custom_call.1} parent=39 // pred_fallthru
        _
    $region40: #{tpu_custom_call.1} parent=5 // pred_fallthru
      _
  $region6: #{tpu_custom_call.1} parent=0 // loop_footer
    %s13 = sadd.s32 1, %s9
  $region7: #{tpu_custom_call.1} parent=0 // loop_footer_branch
    %8 = sbr.rel target = $region3
  $region8: #{tpu_custom_call.1} parent=0 // loop_exit
    _

</llo_original>
